<compile_context>
chip_gen: v7x
topology: tpu7x:2x2x1
jax: 0.10.0
libtpu: 0.0.40
codegen_flags: <defaults>
</compile_context>

<pallas_src>
import jax
import jax.numpy as jnp
from jax import lax
from jax.experimental import pallas as pl
from jax.experimental.pallas import tpu as pltpu

LN_EPS = 1e-5


def _round_up(x, m):
    return -(-x // m) * m


def _tensorcores_per_chip():
    """Best-effort query of TensorCores per chip (v7x=2, v5e/v6e=1)."""
    try:
        info = pltpu.get_tpu_info()
        for attr in ("num_tensorcores", "tensorcores_per_chip", "num_cores",
                     "core_count"):
            v = getattr(info, attr, None)
            if isinstance(v, int) and v > 0:
                return v
    except Exception:
        pass
    try:
        v = getattr(jax.devices()[0], "num_cores", None)
        if isinstance(v, int) and v > 0:
            return v
    except Exception:
        pass
    return 1


def _ln_relu(h, gamma, beta):
    """LayerNorm (biased variance, two-pass for f32 robustness) + affine + ReLU."""
    mu = jnp.mean(h, axis=-1, keepdims=True)
    d = h - mu
    var = jnp.mean(d * d, axis=-1, keepdims=True)
    hn = d * lax.rsqrt(var + LN_EPS)
    return jnp.maximum(hn * gamma + beta, 0.0)


def qnet_kernel(obs_ref, act_ref,
                w1o_ref, w1a_ref, p1_ref,
                w2_ref, p2_ref,
                pf_ref,
                out_ref):
    obs = obs_ref[...].astype(jnp.float32)
    act = act_ref[...].astype(jnp.float32)

    # Block 1: split-weight matmul replaces the wrapper-side concat.
    h = (jnp.dot(obs, w1o_ref[...], preferred_element_type=jnp.float32)
         + jnp.dot(act, w1a_ref[...], preferred_element_type=jnp.float32)
         + p1_ref[0:1, :])
    h = _ln_relu(h, p1_ref[1:2, :], p1_ref[2:3, :])

    # Block 2.
    h = jnp.dot(h, w2_ref[...], preferred_element_type=jnp.float32) + p2_ref[0:1, :]
    h = _ln_relu(h, p2_ref[1:2, :], p2_ref[2:3, :])

    # Final Linear(H2, 1), produced lane-dense as a (1, TB) row:
    # contract h's feature axis with wf on the MXU (M=1, K=H2, N=TB).
    wf_row = pf_ref[0:1, :]          # (1, H2)
    bf = pf_ref[1:2, 0:1]            # (1, 1)
    out = lax.dot_general(wf_row, h, (((1,), (1,)), ((), ())),
                          preferred_element_type=jnp.float32) + bf
    out_ref[...] = out.astype(out_ref.dtype)


def qnet_forward(action, obs, params, *, max_tb=4096):
    """action: (B, num_actions), obs: (B, num_obs). Returns (B, 1) float32."""
    B, num_obs = obs.shape
    num_act = action.shape[1]
    w1o, w1a, p1, w2, p2, pf = params
    H1 = w1o.shape[1]
    H2 = w2.shape[1]

    # Grid sizing: one step per TensorCore when possible (overhead-bound
    # kernel), capped so double-buffered lane-padded blocks stay well under
    # every generation's scoped VMEM default.
    cores = _tensorcores_per_chip()
    if cores > 1 and B > cores * 128:
        TB = min(_round_up(pl.cdiv(B, cores), 128), max_tb)
    else:
        TB = min(B, max_tb)
    grid_n = pl.cdiv(B, TB)
    padded_B = grid_n * TB

    const = lambda i: (0, 0)          # weights / params: same block every step
    batch = lambda i: (i, 0)          # activations: stream over batch rows
    out_map = lambda i: (0, i)        # lane-dense output row: stream over lanes

    cost = pl.CostEstimate(
        flops=int(2 * B * (num_obs * H1 + num_act * H1 + H1 * H2 + H2)
                  + 12 * B * (H1 + H2)),
        transcendentals=int(2 * B),   # two rsqrt per row
        bytes_accessed=int(4 * (B * (num_obs + num_act + 1)
                                + (num_obs + num_act) * H1 + H1 * H2
                                + 3 * H1 + 3 * H2 + 2 * H2)),
    )

    out_row = pl.pallas_call(
        qnet_kernel,
        out_shape=jax.ShapeDtypeStruct((1, padded_B), jnp.float32),
        grid=(grid_n,),
        in_specs=[
            pl.BlockSpec((TB, num_obs), batch),
            pl.BlockSpec((TB, num_act), batch),
            pl.BlockSpec((num_obs, H1), const),
            pl.BlockSpec((num_act, H1), const),
            pl.BlockSpec((3, H1), const),
            pl.BlockSpec((H1, H2), const),
            pl.BlockSpec((3, H2), const),
            pl.BlockSpec((2, H2), const),
        ],
        out_specs=pl.BlockSpec((1, TB), out_map),
        compiler_params=pltpu.CompilerParams(
            dimension_semantics=("parallel",)),
        cost_estimate=cost,
    )(obs, action, w1o, w1a, p1, w2, p2, pf)

    # (1, padded_B) -> (B, 1): contiguous reshape + slice, essentially free.
    return out_row.reshape(-1)[:B].reshape(B, 1)


def _orthogonal(key, shape, gain):
    """Deterministic orthogonal init (matches nn.init.orthogonal_ semantics)."""
    rows, cols = shape
    n = max(rows, cols)
    a = jax.random.normal(key, (n, n), dtype=jnp.float32)
    q, r = jnp.linalg.qr(a)
    q = q * jnp.sign(jnp.diag(r))
    return gain * q[:rows, :cols]


def make_params(key, num_obs, num_actions, hidden_dims):
    """Packed param layout: (w1_obs, w1_act, p1, w2, p2, pf)."""
    assert len(hidden_dims) == 2, "kernel is specialized to two encoder blocks"
    d_in = num_obs + num_actions
    all_dims = [d_in] + hidden_dims
    ks = jax.random.split(key, len(hidden_dims) + 1)

    # Block 1 (split rows for obs / action to avoid the wrapper concat).
    h1 = hidden_dims[0]
    w1 = _orthogonal(ks[0], (all_dims[0], h1), gain=jnp.sqrt(2.0))   # (in, out)
    w1_obs, w1_act = w1[:num_obs], w1[num_obs:]
    p1 = jnp.stack([jnp.zeros((h1,), jnp.float32),    # Linear bias
                    jnp.ones((h1,), jnp.float32),     # LN weight
                    jnp.zeros((h1,), jnp.float32)])   # LN bias

    # Block 2.
    h2 = hidden_dims[1]
    w2 = _orthogonal(ks[1], (all_dims[1], h2), gain=jnp.sqrt(2.0))
    p2 = jnp.stack([jnp.zeros((h2,), jnp.float32),
                    jnp.ones((h2,), jnp.float32),
                    jnp.zeros((h2,), jnp.float32)])

    # Final layer: Linear(h2, 1), gain=1.  pf row0 = wf as a lane row, row1[0] = bf.
    wf = _orthogonal(ks[2], (h2, 1), gain=1.0)[:, 0]                 # (h2,)
    pf = jnp.stack([wf, jnp.zeros((h2,), jnp.float32)])              # bf = 0

    return (w1_obs, w1_act, p1, w2, p2, pf)


def qnet_reference(action, obs, params):
    """Pure-JAX reference (same math as the PyTorch module)."""
    w1o, w1a, p1, w2, p2, pf = params
    x = obs @ w1o + action @ w1a + p1[0]
    for (g, be, nxt_w, nxt_b) in [(p1[1], p1[2], w2, p2[0])]:
        mu = jnp.mean(x, axis=-1, keepdims=True)
        var = jnp.mean((x - mu) ** 2, axis=-1, keepdims=True)
        x = jnp.maximum((x - mu) / jnp.sqrt(var + LN_EPS) * g + be, 0.0)
        x = x @ nxt_w + nxt_b
    mu = jnp.mean(x, axis=-1, keepdims=True)
    var = jnp.mean((x - mu) ** 2, axis=-1, keepdims=True)
    x = jnp.maximum((x - mu) / jnp.sqrt(var + LN_EPS) * p2[1] + p2[2], 0.0)
    return x @ pf[0][:, None] + pf[1, 0]


if __name__ == "__main__":
    num_obs, num_actions = 24, 8
    hidden_dims = [32, 32]

    key = jax.random.PRNGKey(0)
    k_obs, k_act, k_par = jax.random.split(key, 3)
    params = make_params(k_par, num_obs, num_actions, hidden_dims)

    # Small case (single grid step, whole-batch tile, lane dim == full extent).
    batch = 8
    obs = jax.random.normal(k_obs, (batch, num_obs), dtype=jnp.float32)
    action = jax.random.normal(k_act, (batch, num_actions), dtype=jnp.float32)
    out = jax.block_until_ready(qnet_forward(action, obs, params))
    ref = qnet_reference(action, obs, params)
    assert out.shape == (batch, 1)
    assert jnp.allclose(out, ref, atol=1e-4, rtol=1e-4), (out, ref)

    # Larger case: single step on 1-TC chips, 2 parallel steps on 2-TC chips.
    batch_big = 1024
    obs_b = jax.random.normal(k_obs, (batch_big, num_obs), dtype=jnp.float32)
    act_b = jax.random.normal(k_act, (batch_big, num_actions), dtype=jnp.float32)
    out_b = jax.block_until_ready(qnet_forward(act_b, obs_b, params))
    ref_b = qnet_reference(act_b, obs_b, params)
    assert out_b.shape == (batch_big, 1)
    assert jnp.allclose(out_b, ref_b, atol=1e-4, rtol=1e-4)

    # Forced multi-step grid with a ragged last tile (exercises OOB padding
    # and the lane-dense output slicing regardless of chip generation).
    batch_ragged = 600
    obs_r = jax.random.normal(k_obs, (batch_ragged, num_obs), dtype=jnp.float32)
    act_r = jax.random.normal(k_act, (batch_ragged, num_actions), dtype=jnp.float32)
    out_r = jax.block_until_ready(qnet_forward(act_r, obs_r, params, max_tb=256))
    ref_r = qnet_reference(act_r, obs_r, params)
    assert out_r.shape == (batch_ragged, 1)
    assert jnp.allclose(out_r, ref_r, atol=1e-4, rtol=1e-4)

    print("KERNEL_OK")
</pallas_src>

<mosaic_0001>
module attributes {stable_mosaic.version = 11 : i64} {
  func.func @qnet_kernel(%arg0: i32, %arg1: memref<8x24xf32, #tpu.memory_space<vmem>>, %arg2: memref<8x8xf32, #tpu.memory_space<vmem>>, %arg3: memref<24x32xf32, #tpu.memory_space<vmem>>, %arg4: memref<8x32xf32, #tpu.memory_space<vmem>>, %arg5: memref<3x32xf32, #tpu.memory_space<vmem>>, %arg6: memref<32x32xf32, #tpu.memory_space<vmem>>, %arg7: memref<3x32xf32, #tpu.memory_space<vmem>>, %arg8: memref<2x32xf32, #tpu.memory_space<vmem>>, %arg9: memref<1x8xf32, #tpu.memory_space<vmem>>) attributes {dimension_semantics = [#tpu.dimension_semantics<parallel>], iteration_bounds = array<i64: 1>, scalar_prefetch = 0 : i64, scratch_operands = 0 : i64, tpu.core_type = #tpu.core_type<tc>, window_params = [{transform_indices = @transform_0, window_bounds = array<i64: 8, 24>}, {transform_indices = @transform_1, window_bounds = array<i64: 8, 8>}, {pipeline_mode = #tpu.pipeline_mode<synchronous>, transform_indices = @transform_2, window_bounds = array<i64: 24, 32>}, {pipeline_mode = #tpu.pipeline_mode<synchronous>, transform_indices = @transform_3, window_bounds = array<i64: 8, 32>}, {pipeline_mode = #tpu.pipeline_mode<synchronous>, transform_indices = @transform_4, window_bounds = array<i64: 3, 32>}, {pipeline_mode = #tpu.pipeline_mode<synchronous>, transform_indices = @transform_5, window_bounds = array<i64: 32, 32>}, {pipeline_mode = #tpu.pipeline_mode<synchronous>, transform_indices = @transform_6, window_bounds = array<i64: 3, 32>}, {pipeline_mode = #tpu.pipeline_mode<synchronous>, transform_indices = @transform_7, window_bounds = array<i64: 2, 32>}, {transform_indices = @transform_8, window_bounds = array<i64: 1, 8>}]} {
    %c0 = arith.constant 0 : index
    %c0_0 = arith.constant 0 : index
    %0 = vector.load %arg1[%c0, %c0_0] : memref<8x24xf32, #tpu.memory_space<vmem>>, vector<8x24xf32>
    %c0_1 = arith.constant 0 : index
    %c0_2 = arith.constant 0 : index
    %1 = vector.load %arg2[%c0_1, %c0_2] : memref<8x8xf32, #tpu.memory_space<vmem>>, vector<8x8xf32>
    %c0_3 = arith.constant 0 : index
    %c0_4 = arith.constant 0 : index
    %2 = vector.load %arg3[%c0_3, %c0_4] : memref<24x32xf32, #tpu.memory_space<vmem>>, vector<24x32xf32>
    %cst = arith.constant dense<0.000000e+00> : vector<8x32xf32>
    %3 = tpu.matmul %0, %2, %cst {dimension_numbers = #tpu.dot_dimension_numbers<[1], [0], [0], [1], [0, 0, 1, 1], [], []>} : vector<8x24xf32>, vector<24x32xf32>, vector<8x32xf32> -> vector<8x32xf32>
    %c0_5 = arith.constant 0 : index
    %c0_6 = arith.constant 0 : index
    %4 = vector.load %arg4[%c0_5, %c0_6] : memref<8x32xf32, #tpu.memory_space<vmem>>, vector<8x32xf32>
    %cst_7 = arith.constant dense<0.000000e+00> : vector<8x32xf32>
    %5 = tpu.matmul %1, %4, %cst_7 {dimension_numbers = #tpu.dot_dimension_numbers<[1], [0], [0], [1], [0, 0, 1, 1], [], []>} : vector<8x8xf32>, vector<8x32xf32>, vector<8x32xf32> -> vector<8x32xf32>
    %6 = arith.addf %3, %5 : vector<8x32xf32>
    %c0_8 = arith.constant 0 : index
    %c0_9 = arith.constant 0 : index
    %7 = vector.load %arg5[%c0_8, %c0_9] : memref<3x32xf32, #tpu.memory_space<vmem>>, vector<1x32xf32>
    %8 = vector.broadcast %7 : vector<1x32xf32> to vector<8x32xf32>
    %9 = arith.addf %6, %8 : vector<8x32xf32>
    %c1 = arith.constant 1 : index
    %c0_10 = arith.constant 0 : index
    %10 = vector.load %arg5[%c1, %c0_10] : memref<3x32xf32, #tpu.memory_space<vmem>>, vector<1x32xf32>
    %c2 = arith.constant 2 : index
    %c0_11 = arith.constant 0 : index
    %11 = vector.load %arg5[%c2, %c0_11] : memref<3x32xf32, #tpu.memory_space<vmem>>, vector<1x32xf32>
    %cst_12 = arith.constant dense<0.000000e+00> : vector<8xf32>
    %12 = vector.multi_reduction <add>, %9, %cst_12 [1] : vector<8x32xf32> to vector<8xf32>
    %13 = vector.shape_cast %12 : vector<8xf32> to vector<8x1xf32>
    %cst_13 = arith.constant 3.200000e+01 : f32
    %14 = vector.broadcast %cst_13 : f32 to vector<8x1xf32>
    %15 = arith.divf %13, %14 : vector<8x1xf32>
    %16 = vector.broadcast %15 : vector<8x1xf32> to vector<8x32xf32>
    %17 = arith.subf %9, %16 : vector<8x32xf32>
    %18 = arith.mulf %17, %17 : vector<8x32xf32>
    %cst_14 = arith.constant dense<0.000000e+00> : vector<8xf32>
    %19 = vector.multi_reduction <add>, %18, %cst_14 [1] : vector<8x32xf32> to vector<8xf32>
    %20 = vector.shape_cast %19 : vector<8xf32> to vector<8x1xf32>
    %cst_15 = arith.constant 3.200000e+01 : f32
    %21 = vector.broadcast %cst_15 : f32 to vector<8x1xf32>
    %22 = arith.divf %20, %21 : vector<8x1xf32>
    %cst_16 = arith.constant 9.99999974E-6 : f32
    %23 = vector.broadcast %cst_16 : f32 to vector<8x1xf32>
    %24 = arith.addf %22, %23 : vector<8x1xf32>
    %25 = math.rsqrt %24 : vector<8x1xf32>
    %26 = vector.broadcast %25 : vector<8x1xf32> to vector<8x32xf32>
    %27 = arith.mulf %17, %26 : vector<8x32xf32>
    %28 = vector.broadcast %10 : vector<1x32xf32> to vector<8x32xf32>
    %29 = arith.mulf %27, %28 : vector<8x32xf32>
    %30 = vector.broadcast %11 : vector<1x32xf32> to vector<8x32xf32>
    %31 = arith.addf %29, %30 : vector<8x32xf32>
    %cst_17 = arith.constant 0.000000e+00 : f32
    %32 = vector.broadcast %cst_17 : f32 to vector<8x32xf32>
    %33 = arith.maximumf %31, %32 : vector<8x32xf32>
    %c0_18 = arith.constant 0 : index
    %c0_19 = arith.constant 0 : index
    %34 = vector.load %arg6[%c0_18, %c0_19] : memref<32x32xf32, #tpu.memory_space<vmem>>, vector<32x32xf32>
    %cst_20 = arith.constant dense<0.000000e+00> : vector<8x32xf32>
    %35 = tpu.matmul %33, %34, %cst_20 {dimension_numbers = #tpu.dot_dimension_numbers<[1], [0], [0], [1], [0, 0, 1, 1], [], []>} : vector<8x32xf32>, vector<32x32xf32>, vector<8x32xf32> -> vector<8x32xf32>
    %c0_21 = arith.constant 0 : index
    %c0_22 = arith.constant 0 : index
    %36 = vector.load %arg7[%c0_21, %c0_22] : memref<3x32xf32, #tpu.memory_space<vmem>>, vector<1x32xf32>
    %37 = vector.broadcast %36 : vector<1x32xf32> to vector<8x32xf32>
    %38 = arith.addf %35, %37 : vector<8x32xf32>
    %c1_23 = arith.constant 1 : index
    %c0_24 = arith.constant 0 : index
    %39 = vector.load %arg7[%c1_23, %c0_24] : memref<3x32xf32, #tpu.memory_space<vmem>>, vector<1x32xf32>
    %c2_25 = arith.constant 2 : index
    %c0_26 = arith.constant 0 : index
    %40 = vector.load %arg7[%c2_25, %c0_26] : memref<3x32xf32, #tpu.memory_space<vmem>>, vector<1x32xf32>
    %cst_27 = arith.constant dense<0.000000e+00> : vector<8xf32>
    %41 = vector.multi_reduction <add>, %38, %cst_27 [1] : vector<8x32xf32> to vector<8xf32>
    %42 = vector.shape_cast %41 : vector<8xf32> to vector<8x1xf32>
    %cst_28 = arith.constant 3.200000e+01 : f32
    %43 = vector.broadcast %cst_28 : f32 to vector<8x1xf32>
    %44 = arith.divf %42, %43 : vector<8x1xf32>
    %45 = vector.broadcast %44 : vector<8x1xf32> to vector<8x32xf32>
    %46 = arith.subf %38, %45 : vector<8x32xf32>
    %47 = arith.mulf %46, %46 : vector<8x32xf32>
    %cst_29 = arith.constant dense<0.000000e+00> : vector<8xf32>
    %48 = vector.multi_reduction <add>, %47, %cst_29 [1] : vector<8x32xf32> to vector<8xf32>
    %49 = vector.shape_cast %48 : vector<8xf32> to vector<8x1xf32>
    %cst_30 = arith.constant 3.200000e+01 : f32
    %50 = vector.broadcast %cst_30 : f32 to vector<8x1xf32>
    %51 = arith.divf %49, %50 : vector<8x1xf32>
    %cst_31 = arith.constant 9.99999974E-6 : f32
    %52 = vector.broadcast %cst_31 : f32 to vector<8x1xf32>
    %53 = arith.addf %51, %52 : vector<8x1xf32>
    %54 = math.rsqrt %53 : vector<8x1xf32>
    %55 = vector.broadcast %54 : vector<8x1xf32> to vector<8x32xf32>
    %56 = arith.mulf %46, %55 : vector<8x32xf32>
    %57 = vector.broadcast %39 : vector<1x32xf32> to vector<8x32xf32>
    %58 = arith.mulf %56, %57 : vector<8x32xf32>
    %59 = vector.broadcast %40 : vector<1x32xf32> to vector<8x32xf32>
    %60 = arith.addf %58, %59 : vector<8x32xf32>
    %cst_32 = arith.constant 0.000000e+00 : f32
    %61 = vector.broadcast %cst_32 : f32 to vector<8x32xf32>
    %62 = arith.maximumf %60, %61 : vector<8x32xf32>
    %c0_33 = arith.constant 0 : index
    %c0_34 = arith.constant 0 : index
    %63 = vector.load %arg8[%c0_33, %c0_34] : memref<2x32xf32, #tpu.memory_space<vmem>>, vector<1x32xf32>
    %c1_35 = arith.constant 1 : index
    %c0_36 = arith.constant 0 : index
    %64 = vector.load %arg8[%c1_35, %c0_36] : memref<2x32xf32, #tpu.memory_space<vmem>>, vector<1x1xf32>
    %cst_37 = arith.constant dense<0.000000e+00> : vector<1x8xf32>
    %65 = tpu.matmul %63, %62, %cst_37 {dimension_numbers = #tpu.dot_dimension_numbers<[1], [1], [0], [0], [0, 0, 1, 0], [], []>} : vector<1x32xf32>, vector<8x32xf32>, vector<1x8xf32> -> vector<1x8xf32>
    %66 = vector.broadcast %64 : vector<1x1xf32> to vector<1x8xf32>
    %67 = arith.addf %65, %66 : vector<1x8xf32>
    %c0_38 = arith.constant 0 : index
    %c0_39 = arith.constant 0 : index
    %68 = vector.load %arg9[%c0_38, %c0_39] : memref<1x8xf32, #tpu.memory_space<vmem>>, vector<1x8xf32>
    tpu.vector_store %arg9[%c0_38, %c0_39], %67 {strides = array<i32>} : memref<1x8xf32, #tpu.memory_space<vmem>>, vector<1x8xf32>,
    return
  }
  func.func @transform_0(%arg0: i32) -> (i32, i32) {
    %c0_i32 = arith.constant 0 : i32
    %c0_i32_0 = arith.constant 0 : i32
    return %arg0, %c0_i32 : i32, i32
  }
  func.func @transform_1(%arg0: i32) -> (i32, i32) {
    %c0_i32 = arith.constant 0 : i32
    %c0_i32_0 = arith.constant 0 : i32
    return %arg0, %c0_i32 : i32, i32
  }
  func.func @transform_2(%arg0: i32) -> (i32, i32) {
    %c0_i32 = arith.constant 0 : i32
    %c0_i32_0 = arith.constant 0 : i32
    %c0_i32_1 = arith.constant 0 : i32
    return %c0_i32, %c0_i32_0 : i32, i32
  }
  func.func @transform_3(%arg0: i32) -> (i32, i32) {
    %c0_i32 = arith.constant 0 : i32
    %c0_i32_0 = arith.constant 0 : i32
    %c0_i32_1 = arith.constant 0 : i32
    return %c0_i32, %c0_i32_0 : i32, i32
  }
  func.func @transform_4(%arg0: i32) -> (i32, i32) {
    %c0_i32 = arith.constant 0 : i32
    %c0_i32_0 = arith.constant 0 : i32
    %c0_i32_1 = arith.constant 0 : i32
    return %c0_i32, %c0_i32_0 : i32, i32
  }
  func.func @transform_5(%arg0: i32) -> (i32, i32) {
    %c0_i32 = arith.constant 0 : i32
    %c0_i32_0 = arith.constant 0 : i32
    %c0_i32_1 = arith.constant 0 : i32
    return %c0_i32, %c0_i32_0 : i32, i32
  }
  func.func @transform_6(%arg0: i32) -> (i32, i32) {
    %c0_i32 = arith.constant 0 : i32
    %c0_i32_0 = arith.constant 0 : i32
    %c0_i32_1 = arith.constant 0 : i32
    return %c0_i32, %c0_i32_0 : i32, i32
  }
  func.func @transform_7(%arg0: i32) -> (i32, i32) {
    %c0_i32 = arith.constant 0 : i32
    %c0_i32_0 = arith.constant 0 : i32
    %c0_i32_1 = arith.constant 0 : i32
    return %c0_i32, %c0_i32_0 : i32, i32
  }
  func.func @transform_8(%arg0: i32) -> (i32, i32) {
    %c0_i32 = arith.constant 0 : i32
    %c0_i32_0 = arith.constant 0 : i32
    return %c0_i32, %arg0 : i32, i32
  }
}

</mosaic_0001>

<llo_original>
// kernel: tpu_custom_call.1
$region0: #{tpu_custom_call.1}
  #allocation0 [shape = 'u32[]', space=smem, size = 0x4, offset = 0x4, fixed_abs, tag = 'smem constant byte address 0x4 - core index']
  #allocation1 [shape = 'u32[144,128]{1,0:T(1,128)}', space=vmem, size = 0x12000, scoped, tag = 'internal scratch']
  %s0 = inlined_call_operand.hbm [shape: f32[8,24], index: 0, kind: input, shape index: {}]
  %s1 = inlined_call_operand.hbm [shape: f32[8,8], index: 1, kind: input, shape index: {}]
  %s2 = inlined_call_operand.hbm [shape: f32[24,32], index: 2, kind: input, shape index: {}]
  %s3 = inlined_call_operand.vmem [shape: f32[8,32], index: 3, kind: input, shape index: {}]
  %s4 = inlined_call_operand.vmem [shape: f32[3,32], index: 4, kind: input, shape index: {}]
  %s5 = inlined_call_operand.hbm [shape: f32[32,32], index: 5, kind: input, shape index: {}]
  %s6 = inlined_call_operand.vmem [shape: f32[3,32], index: 6, kind: input, shape index: {}]
  %s7 = inlined_call_operand.vmem [shape: f32[2,32], index: 7, kind: input, shape index: {}]
  %s8 = inlined_call_operand.hbm [shape: f32[1,8], index: 8, kind: output, shape index: {}]
  %s9 = sld [smem:[#allocation0]]
  $region58: #{tpu_custom_call.1} parent=0
    _
  %s11 = ssub.s32 1, %s9
  %s12 = scalar_select 0, %s11, %s9
  $region1: #{tpu_custom_call.1} parent=0
    #allocation2 [shape = 'u8[4096]{0}', space=vmem, size = 0x1000, scoped, tag = 'input window, operand 0, single buffered']
    #allocation3 [shape = 's32[1]{0}', space=sflag, size = 0x4, scoped, tag = 'scoped memory for tpu_custom_call.1']
    #allocation4 [shape = 's32[1]{0}', space=sflag, size = 0x4, scoped, tag = 'scoped memory for tpu_custom_call.1']
    #allocation5 [shape = 'u8[4096]{0}', space=vmem, size = 0x1000, scoped, tag = 'input window, operand 1, single buffered']
    #allocation6 [shape = 's32[1]{0}', space=sflag, size = 0x4, scoped, tag = 'scoped memory for tpu_custom_call.1']
    #allocation7 [shape = 'u8[12288]{0}', space=vmem, size = 0x3000, scoped, tag = 'input window, operand 2, single buffered']
    #allocation8 [shape = 'u8[16384]{0}', space=vmem, size = 0x4000, scoped, tag = 'input window, operand 5, single buffered']
    #allocation9 [shape = 's32[1]{0}', space=sflag, size = 0x4, scoped, tag = 'scoped memory for tpu_custom_call.1']
    #allocation10 [shape = 'u8[512]{0}', space=vmem, size = 0x400, scoped, tag = 'output window, operand 0, single buffered']
    %13 = vsyncpa [#allocation3], 0
    %14 = vsyncpa [#allocation6], 0
    %15 = vsyncpa [#allocation9], 0
    %16 = vsyncpa [#allocation4], 0
    // Predicated region
    $region2: #{tpu_custom_call.1} parent=1 // pred_check
      _
    $region3: #{tpu_custom_call.1} parent=1 // pred_check_branch
      %18 = sbr.rel (0) target = $region5
    $region4: #{tpu_custom_call.1} parent=1 // pred_region
      %s20 = ssub.s32 128, 128
      %21 = vsyncadd [#allocation3], %s20
      %s23 = sshll.u32 [#allocation2], 4
      %s24 = int_to_ptr.vmem [resolvable:$true] %s23
      %26 = dma.hbm_to_vmem [thread:$0]  %s0, 128, %s24, [#allocation3]
    $region5: #{tpu_custom_call.1} parent=1 // pred_fallthru
      _
    // Predicated region
    $region6: #{tpu_custom_call.1} parent=1 // pred_check
      _
    $region7: #{tpu_custom_call.1} parent=1 // pred_check_branch
      %28 = sbr.rel (0) target = $region9
    $region8: #{tpu_custom_call.1} parent=1 // pred_region
      %s30 = ssub.s32 128, 128
      %31 = vsyncadd [#allocation6], %s30
      %s33 = sshll.u32 [#allocation5], 4
      %s34 = int_to_ptr.vmem [resolvable:$true] %s33
      %36 = dma.hbm_to_vmem [thread:$0]  %s1, 128, %s34, [#allocation6]
    $region9: #{tpu_custom_call.1} parent=1 // pred_fallthru
      _
    // Predicated region
    $region10: #{tpu_custom_call.1} parent=1 // pred_check
      _
    $region11: #{tpu_custom_call.1} parent=1 // pred_check_branch
      %38 = sbr.rel (0) target = $region13
    $region12: #{tpu_custom_call.1} parent=1 // pred_region
      %s40 = ssub.s32 384, 384
      %41 = vsyncadd [#allocation6], %s40
      %s42 = sshll.u32 [#allocation7], 4
      %s43 = int_to_ptr.vmem [resolvable:$true] %s42
      %48 = dma.hbm_to_vmem [thread:$0]  %s2, 384, %s43, [#allocation6], 128, 128, 8
    $region13: #{tpu_custom_call.1} parent=1 // pred_fallthru
      _
    // Predicated region
    $region14: #{tpu_custom_call.1} parent=1 // pred_check
      _
    $region15: #{tpu_custom_call.1} parent=1 // pred_check_branch
      %50 = sbr.rel (0) target = $region17
    $region16: #{tpu_custom_call.1} parent=1 // pred_region
      _
    $region17: #{tpu_custom_call.1} parent=1 // pred_fallthru
      _
    // Predicated region
    $region18: #{tpu_custom_call.1} parent=1 // pred_check
      _
    $region19: #{tpu_custom_call.1} parent=1 // pred_check_branch
      %52 = sbr.rel (0) target = $region21
    $region20: #{tpu_custom_call.1} parent=1 // pred_region
      _
    $region21: #{tpu_custom_call.1} parent=1 // pred_fallthru
      _
    // Predicated region
    $region22: #{tpu_custom_call.1} parent=1 // pred_check
      _
    $region23: #{tpu_custom_call.1} parent=1 // pred_check_branch
      %54 = sbr.rel (0) target = $region25
    $region24: #{tpu_custom_call.1} parent=1 // pred_region
      %s56 = ssub.s32 512, 512
      %57 = vsyncadd [#allocation9], %s56
      %s58 = sshll.u32 [#allocation8], 4
      %s59 = int_to_ptr.vmem [resolvable:$true] %s58
      %64 = dma.hbm_to_vmem [thread:$0]  %s5, 512, %s59, [#allocation9], 128, 128, 8
    $region25: #{tpu_custom_call.1} parent=1 // pred_fallthru
      _
    // Predicated region
    $region26: #{tpu_custom_call.1} parent=1 // pred_check
      _
    $region27: #{tpu_custom_call.1} parent=1 // pred_check_branch
      %66 = sbr.rel (0) target = $region29
    $region28: #{tpu_custom_call.1} parent=1 // pred_region
      _
    $region29: #{tpu_custom_call.1} parent=1 // pred_fallthru
      _
    // Predicated region
    $region30: #{tpu_custom_call.1} parent=1 // pred_check
      _
    $region31: #{tpu_custom_call.1} parent=1 // pred_check_branch
      %68 = sbr.rel (0) target = $region33
    $region32: #{tpu_custom_call.1} parent=1 // pred_region
      _
    $region33: #{tpu_custom_call.1} parent=1 // pred_fallthru
      _
    // Predicated region
    $region34: #{tpu_custom_call.1} parent=1 // pred_check
      _
    $region35: #{tpu_custom_call.1} parent=1 // pred_check_branch
      %70 = sbr.rel (0) target = $region37
    $region36: #{tpu_custom_call.1} parent=1 // pred_region
      %71 = dma.done [#allocation3], 128
    $region37: #{tpu_custom_call.1} parent=1 // pred_fallthru
      _
    // Predicated region
    $region38: #{tpu_custom_call.1} parent=1 // pred_check
      _
    $region39: #{tpu_custom_call.1} parent=1 // pred_check_branch
      %73 = sbr.rel (0) target = $region41
    $region40: #{tpu_custom_call.1} parent=1 // pred_region
      %74 = dma.done [#allocation6], 128
    $region41: #{tpu_custom_call.1} parent=1 // pred_fallthru
      _
    // Predicated region
    $region42: #{tpu_custom_call.1} parent=1 // pred_check
      _
    $region43: #{tpu_custom_call.1} parent=1 // pred_check_branch
      %76 = sbr.rel (0) target = $region45
    $region44: #{tpu_custom_call.1} parent=1 // pred_region
      %77 = dma.done [#allocation6], 384
    $region45: #{tpu_custom_call.1} parent=1 // pred_fallthru
      _
    // Predicated region
    $region46: #{tpu_custom_call.1} parent=1 // pred_check
      _
    $region47: #{tpu_custom_call.1} parent=1 // pred_check_branch
      %79 = sbr.rel (0) target = $region49
    $region48: #{tpu_custom_call.1} parent=1 // pred_region
      %80 = dma.done [#allocation9], 512
    $region49: #{tpu_custom_call.1} parent=1 // pred_fallthru
      _
    %v81 = vld [vmem:[#allocation2] sm:$0xff]
    %v82 = vld [vmem:[#allocation5] sm:$0xff]
    %v83 = vld [vmem:[#allocation7] sm:$0xff]
    %v84 = vld [vmem:[#allocation7 + $0x8] sm:$0xff]
    %v85 = vld [vmem:[#allocation7 + $0x10] sm:$0xff]
    %v86 = vld [vmem:[%s3] sm:$0xff]
    %vm87 = vcmask 64512
    %v89 = vsel %vm87, %v82, 0
    %91 = vmatprep.subr.mxu0 0.0
    %92 = vmatpush1.msra.mxu0 %v86
    %93 = vmatprep.subr.mxu0 0.0
    %94 = vmatpush1.msra.mxu0 0.0
    %95 = vmatprep.subr.mxu0 0.0
    %96 = vmatpush1.msra.mxu0 0.0
    %97 = vmatprep.subr.mxu0 0.0
    %98 = vmatpush1.msra.mxu0 0.0
    %99 = vmatprep.subr.mxu0 0.0
    %100 = vmatpush1.msra.mxu0 0.0
    %101 = vmatprep.subr.mxu0 0.0
    %102 = vmatpush1.msra.mxu0 0.0
    %103 = vmatprep.subr.mxu0 0.0
    %104 = vmatpush1.msra.mxu0 0.0
    %105 = vmatprep.subr.mxu0 0.0
    %106 = vmatpush1.msra.mxu0 0.0
    %107 = vmatprep.subr.mxu0 0.0
    %108 = vmatpush1.msra.mxu0 0.0
    %109 = vmatprep.subr.mxu0 0.0
    %110 = vmatpush1.msra.mxu0 0.0
    %111 = vmatprep.subr.mxu0 0.0
    %112 = vmatpush1.msra.mxu0 0.0
    %113 = vmatprep.subr.mxu0 0.0
    %114 = vmatpush1.msra.mxu0 0.0
    %115 = vmatprep.subr.mxu0 0.0
    %116 = vmatpush1.msra.mxu0 0.0
    %117 = vmatprep.subr.mxu0 0.0
    %118 = vmatpush1.msra.mxu0 0.0
    %119 = vmatprep.subr.mxu0 0.0
    %120 = vmatpush1.msra.mxu0 0.0
    %121 = vmatprep.subr.mxu0 0.0
    %122 = vmatpush1.msra.mxu0 0.0
    %123 = vmatprep.subr.mxu0 0.0
    %124 = vmatpush1.msra.mxu0 0.0
    %125 = vmatprep.subr.mxu0 0.0
    %126 = vmatpush1.msra.mxu0 0.0
    %127 = vmatprep.subr.mxu0 0.0
    %128 = vmatpush1.msra.mxu0 0.0
    %129 = vmatprep.subr.mxu0 0.0
    %130 = vmatpush1.msra.mxu0 0.0
    %131 = vmatprep.subr.mxu0 0.0
    %132 = vmatpush1.msra.mxu0 0.0
    %133 = vmatprep.subr.mxu0 0.0
    %134 = vmatpush1.msra.mxu0 0.0
    %135 = vmatprep.subr.mxu0 0.0
    %136 = vmatpush1.msra.mxu0 0.0
    %137 = vmatprep.subr.mxu0 0.0
    %138 = vmatpush1.msra.mxu0 0.0
    %139 = vmatprep.subr.mxu0 0.0
    %140 = vmatpush1.msra.mxu0 0.0
    %141 = vmatprep.subr.mxu0 0.0
    %142 = vmatpush1.msra.mxu0 0.0
    %143 = vmatprep.subr.mxu0 0.0
    %144 = vmatpush1.msra.mxu0 0.0
    %145 = vmatprep.subr.mxu0 0.0
    %146 = vmatpush1.msra.mxu0 0.0
    %147 = vmatprep.subr.mxu0 0.0
    %148 = vmatpush1.msra.mxu0 0.0
    %149 = vmatprep.subr.mxu0 0.0
    %150 = vmatpush1.msra.mxu0 0.0
    %151 = vmatprep.subr.mxu0 0.0
    %152 = vmatpush1.msra.mxu0 0.0
    %153 = vmatprep.subr.mxu0 0.0
    %154 = vmatpush1.msra.mxu0 0.0
    %155 = vmatprep.mubr.f32.mxu0 0.0
    %156 = vmatmul.mubr.f32.gmra.mrb[0].mxu0 %v89
    %v157 = vpop.f32.mrb[0].mxu0
    %v158 = vadd.f32 0.0, %v157
    %v159 = vpop.f32.mrb[0].mxu0
    %160 = vdwg.mxu0
    %vm161 = vcmask 195584
    %v163 = vsel %vm161, %v81, 0
    %165 = vmatprep.subr.mxu0 0.0
    %166 = vmatpush1.msra.mxu0 %v83
    %167 = vmatprep.subr.mxu0 0.0
    %168 = vmatpush1.msra.mxu0 %v84
    %169 = vmatprep.subr.mxu0 0.0
    %170 = vmatpush1.msra.mxu0 %v85
    %171 = vmatprep.subr.mxu0 0.0
    %172 = vmatpush1.msra.mxu0 0.0
    %173 = vmatprep.subr.mxu0 0.0
    %174 = vmatpush1.msra.mxu0 0.0
    %175 = vmatprep.subr.mxu0 0.0
    %176 = vmatpush1.msra.mxu0 0.0
    %177 = vmatprep.subr.mxu0 0.0
    %178 = vmatpush1.msra.mxu0 0.0
    %179 = vmatprep.subr.mxu0 0.0
    %180 = vmatpush1.msra.mxu0 0.0
    %181 = vmatprep.subr.mxu0 0.0
    %182 = vmatpush1.msra.mxu0 0.0
    %183 = vmatprep.subr.mxu0 0.0
    %184 = vmatpush1.msra.mxu0 0.0
    %185 = vmatprep.subr.mxu0 0.0
    %186 = vmatpush1.msra.mxu0 0.0
    %187 = vmatprep.subr.mxu0 0.0
    %188 = vmatpush1.msra.mxu0 0.0
    %189 = vmatprep.subr.mxu0 0.0
    %190 = vmatpush1.msra.mxu0 0.0
    %191 = vmatprep.subr.mxu0 0.0
    %192 = vmatpush1.msra.mxu0 0.0
    %193 = vmatprep.subr.mxu0 0.0
    %194 = vmatpush1.msra.mxu0 0.0
    %195 = vmatprep.subr.mxu0 0.0
    %196 = vmatpush1.msra.mxu0 0.0
    %197 = vmatprep.subr.mxu0 0.0
    %198 = vmatpush1.msra.mxu0 0.0
    %199 = vmatprep.subr.mxu0 0.0
    %200 = vmatpush1.msra.mxu0 0.0
    %201 = vmatprep.subr.mxu0 0.0
    %202 = vmatpush1.msra.mxu0 0.0
    %203 = vmatprep.subr.mxu0 0.0
    %204 = vmatpush1.msra.mxu0 0.0
    %205 = vmatprep.subr.mxu0 0.0
    %206 = vmatpush1.msra.mxu0 0.0
    %207 = vmatprep.subr.mxu0 0.0
    %208 = vmatpush1.msra.mxu0 0.0
    %209 = vmatprep.subr.mxu0 0.0
    %210 = vmatpush1.msra.mxu0 0.0
    %211 = vmatprep.subr.mxu0 0.0
    %212 = vmatpush1.msra.mxu0 0.0
    %213 = vmatprep.subr.mxu0 0.0
    %214 = vmatpush1.msra.mxu0 0.0
    %215 = vmatprep.subr.mxu0 0.0
    %216 = vmatpush1.msra.mxu0 0.0
    %217 = vmatprep.subr.mxu0 0.0
    %218 = vmatpush1.msra.mxu0 0.0
    %219 = vmatprep.subr.mxu0 0.0
    %220 = vmatpush1.msra.mxu0 0.0
    %221 = vmatprep.subr.mxu0 0.0
    %222 = vmatpush1.msra.mxu0 0.0
    %223 = vmatprep.subr.mxu0 0.0
    %224 = vmatpush1.msra.mxu0 0.0
    %225 = vmatprep.subr.mxu0 0.0
    %226 = vmatpush1.msra.mxu0 0.0
    %227 = vmatprep.subr.mxu0 0.0
    %228 = vmatpush1.msra.mxu0 0.0
    %229 = vmatprep.mubr.f32.mxu0 0.0
    %230 = vmatmul.mubr.f32.gmra.mrb[0].mxu0 %v163
    %v231 = vpop.f32.mrb[0].mxu0
    %v232 = vadd.f32 %v158, %v231
    %v233 = vpop.f32.mrb[0].mxu0
    %234 = vdwg.mxu0
    %v235 = vld [vmem:[%s4] sm:$0x1]
    %v236 = vlaneseq
    %v237 = vshrl.u32 %v236, 7
    %v238 = vsub.s32 0, %v237
    %v239 = vrot.slane %v235, %v238
    %v240 = vadd.f32 %v232, %v239
    %v241 = vld [vmem:[%s4 + $0x1] sm:$0x1]
    %v242 = vld [vmem:[%s4 + $0x2] sm:$0x1]
    %vm243 = vcmask 261120
    %v244 = vsel %vm243, %v240, 0.0
    %245 = vadd.xlane.f32.xlu0 %v244
    %v246 = vpop.xlane.xlu0 %245
    %v247 = vrcp.pop 32.0
    %v248 = vmul.f32 %v246, %v247
    %v249 = vsub.f32 %v240, %v248
    %v250 = vmul.f32 %v249, %v249
    %v251 = vsel %vm243, %v250, 0.0
    %252 = vadd.xlane.f32.xlu0 %v251
    %v253 = vpop.xlane.xlu0 %252
    %v254 = vmul.f32 %v253, %v247
    %v255 = vadd.f32 %v254, 1e-05
    %v256 = vrsqrt.pop %v255
    %v257 = vmul.f32 %v249, %v256
    %v258 = vlaneseq
    %v259 = vshrl.u32 %v258, 7
    %v260 = vsub.s32 0, %v259
    %v261 = vrot.slane %v241, %v260
    %v262 = vmul.f32 %v257, %v261
    %v263 = vlaneseq
    %v264 = vshrl.u32 %v263, 7
    %v265 = vsub.s32 0, %v264
    %v266 = vrot.slane %v242, %v265
    %v267 = vadd.f32 %v262, %v266
    %v268 = vmax.f32 %v267, 0.0
    %v269 = vld [vmem:[#allocation8] sm:$0xff]
    %v270 = vld [vmem:[#allocation8 + $0x8] sm:$0xff]
    %v271 = vld [vmem:[#allocation8 + $0x10] sm:$0xff]
    %v272 = vld [vmem:[#allocation8 + $0x18] sm:$0xff]
    %v273 = vld [vmem:[%s6] sm:$0x1]
    %v274 = vlaneseq
    %v275 = vshrl.u32 %v274, 7
    %v276 = vsub.s32 0, %v275
    %v277 = vrot.slane %v273, %v276
    %v279 = vsel %vm243, %v268, 0
    %281 = vmatprep.subr.mxu0 0.0
    %282 = vmatpush1.msra.mxu0 %v269
    %283 = vmatprep.subr.mxu0 0.0
    %284 = vmatpush1.msra.mxu0 %v270
    %285 = vmatprep.subr.mxu0 0.0
    %286 = vmatpush1.msra.mxu0 %v271
    %287 = vmatprep.subr.mxu0 0.0
    %288 = vmatpush1.msra.mxu0 %v272
    %289 = vmatprep.subr.mxu0 0.0
    %290 = vmatpush1.msra.mxu0 0.0
    %291 = vmatprep.subr.mxu0 0.0
    %292 = vmatpush1.msra.mxu0 0.0
    %293 = vmatprep.subr.mxu0 0.0
    %294 = vmatpush1.msra.mxu0 0.0
    %295 = vmatprep.subr.mxu0 0.0
    %296 = vmatpush1.msra.mxu0 0.0
    %297 = vmatprep.subr.mxu0 0.0
    %298 = vmatpush1.msra.mxu0 0.0
    %299 = vmatprep.subr.mxu0 0.0
    %300 = vmatpush1.msra.mxu0 0.0
    %301 = vmatprep.subr.mxu0 0.0
    %302 = vmatpush1.msra.mxu0 0.0
    %303 = vmatprep.subr.mxu0 0.0
    %304 = vmatpush1.msra.mxu0 0.0
    %305 = vmatprep.subr.mxu0 0.0
    %306 = vmatpush1.msra.mxu0 0.0
    %307 = vmatprep.subr.mxu0 0.0
    %308 = vmatpush1.msra.mxu0 0.0
    %309 = vmatprep.subr.mxu0 0.0
    %310 = vmatpush1.msra.mxu0 0.0
    %311 = vmatprep.subr.mxu0 0.0
    %312 = vmatpush1.msra.mxu0 0.0
    %313 = vmatprep.subr.mxu0 0.0
    %314 = vmatpush1.msra.mxu0 0.0
    %315 = vmatprep.subr.mxu0 0.0
    %316 = vmatpush1.msra.mxu0 0.0
    %317 = vmatprep.subr.mxu0 0.0
    %318 = vmatpush1.msra.mxu0 0.0
    %319 = vmatprep.subr.mxu0 0.0
    %320 = vmatpush1.msra.mxu0 0.0
    %321 = vmatprep.subr.mxu0 0.0
    %322 = vmatpush1.msra.mxu0 0.0
    %323 = vmatprep.subr.mxu0 0.0
    %324 = vmatpush1.msra.mxu0 0.0
    %325 = vmatprep.subr.mxu0 0.0
    %326 = vmatpush1.msra.mxu0 0.0
    %327 = vmatprep.subr.mxu0 0.0
    %328 = vmatpush1.msra.mxu0 0.0
    %329 = vmatprep.subr.mxu0 0.0
    %330 = vmatpush1.msra.mxu0 0.0
    %331 = vmatprep.subr.mxu0 0.0
    %332 = vmatpush1.msra.mxu0 0.0
    %333 = vmatprep.subr.mxu0 0.0
    %334 = vmatpush1.msra.mxu0 0.0
    %335 = vmatprep.subr.mxu0 0.0
    %336 = vmatpush1.msra.mxu0 0.0
    %337 = vmatprep.subr.mxu0 0.0
    %338 = vmatpush1.msra.mxu0 0.0
    %339 = vmatprep.subr.mxu0 0.0
    %340 = vmatpush1.msra.mxu0 0.0
    %341 = vmatprep.subr.mxu0 0.0
    %342 = vmatpush1.msra.mxu0 0.0
    %343 = vmatprep.subr.mxu0 0.0
    %344 = vmatpush1.msra.mxu0 0.0
    %345 = vmatprep.mubr.f32.mxu0 0.0
    %346 = vmatmul.mubr.f32.gmra.mrb[0].mxu0 %v279
    %v347 = vpop.f32.mrb[0].mxu0
    %v348 = vadd.f32 %v277, %v347
    %v349 = vpop.f32.mrb[0].mxu0
    %350 = vdwg.mxu0
    %v351 = vld [vmem:[%s6 + $0x1] sm:$0x1]
    %v352 = vld [vmem:[%s6 + $0x2] sm:$0x1]
    %v353 = vsel %vm243, %v348, 0.0
    %354 = vadd.xlane.f32.xlu0 %v353
    %v355 = vpop.xlane.xlu0 %354
    %v356 = vmul.f32 %v355, %v247
    %v357 = vsub.f32 %v348, %v356
    %v358 = vmul.f32 %v357, %v357
    %v359 = vsel %vm243, %v358, 0.0
    %360 = vadd.xlane.f32.xlu0 %v359
    %v361 = vpop.xlane.xlu0 %360
    %v362 = vmul.f32 %v361, %v247
    %v363 = vadd.f32 %v362, 1e-05
    %v364 = vrsqrt.pop %v363
    %v365 = vmul.f32 %v357, %v364
    %v366 = vlaneseq
    %v367 = vshrl.u32 %v366, 7
    %v368 = vsub.s32 0, %v367
    %v369 = vrot.slane %v351, %v368
    %v370 = vmul.f32 %v365, %v369
    %v371 = vlaneseq
    %v372 = vshrl.u32 %v371, 7
    %v373 = vsub.s32 0, %v372
    %v374 = vrot.slane %v352, %v373
    %v375 = vadd.f32 %v370, %v374
    %v376 = vmax.f32 %v375, 0.0
    %v377 = vld [vmem:[%s7] sm:$0x1]
    %v378 = vld [vmem:[%s7 + $0x1] sm:$0x1]
    %380 = vset.pattern.permute.xlu0 0
    %381 = vperm.xlu0 %380, %v378
    %v382 = vpop.permute.xlu0 %381
    %v385 = vsel %vm243, %v377, 0
    %v388 = vsel %vm243, %v376, 0
    %390 = vmatprep.subr.mxu0 0.0
    %391 = vmatpush1.xpose.msra.mxu0 %v388
    %392 = vmatprep.subr.mxu0 0.0
    %393 = vmatpush1.xpose.msra.mxu0 0.0
    %394 = vmatprep.subr.mxu0 0.0
    %395 = vmatpush1.xpose.msra.mxu0 0.0
    %396 = vmatprep.subr.mxu0 0.0
    %397 = vmatpush1.xpose.msra.mxu0 0.0
    %398 = vmatprep.subr.mxu0 0.0
    %399 = vmatpush1.xpose.msra.mxu0 0.0
    %400 = vmatprep.subr.mxu0 0.0
    %401 = vmatpush1.xpose.msra.mxu0 0.0
    %402 = vmatprep.subr.mxu0 0.0
    %403 = vmatpush1.xpose.msra.mxu0 0.0
    %404 = vmatprep.subr.mxu0 0.0
    %405 = vmatpush1.xpose.msra.mxu0 0.0
    %406 = vmatprep.subr.mxu0 0.0
    %407 = vmatpush1.xpose.msra.mxu0 0.0
    %408 = vmatprep.subr.mxu0 0.0
    %409 = vmatpush1.xpose.msra.mxu0 0.0
    %410 = vmatprep.subr.mxu0 0.0
    %411 = vmatpush1.xpose.msra.mxu0 0.0
    %412 = vmatprep.subr.mxu0 0.0
    %413 = vmatpush1.xpose.msra.mxu0 0.0
    %414 = vmatprep.subr.mxu0 0.0
    %415 = vmatpush1.xpose.msra.mxu0 0.0
    %416 = vmatprep.subr.mxu0 0.0
    %417 = vmatpush1.xpose.msra.mxu0 0.0
    %418 = vmatprep.subr.mxu0 0.0
    %419 = vmatpush1.xpose.msra.mxu0 0.0
    %420 = vmatprep.subr.mxu0 0.0
    %421 = vmatpush1.xpose.msra.mxu0 0.0
    %422 = vmatprep.subr.mxu0 0.0
    %423 = vmatpush1.xpose.msra.mxu0 0.0
    %424 = vmatprep.subr.mxu0 0.0
    %425 = vmatpush1.xpose.msra.mxu0 0.0
    %426 = vmatprep.subr.mxu0 0.0
    %427 = vmatpush1.xpose.msra.mxu0 0.0
    %428 = vmatprep.subr.mxu0 0.0
    %429 = vmatpush1.xpose.msra.mxu0 0.0
    %430 = vmatprep.subr.mxu0 0.0
    %431 = vmatpush1.xpose.msra.mxu0 0.0
    %432 = vmatprep.subr.mxu0 0.0
    %433 = vmatpush1.xpose.msra.mxu0 0.0
    %434 = vmatprep.subr.mxu0 0.0
    %435 = vmatpush1.xpose.msra.mxu0 0.0
    %436 = vmatprep.subr.mxu0 0.0
    %437 = vmatpush1.xpose.msra.mxu0 0.0
    %438 = vmatprep.subr.mxu0 0.0
    %439 = vmatpush1.xpose.msra.mxu0 0.0
    %440 = vmatprep.subr.mxu0 0.0
    %441 = vmatpush1.xpose.msra.mxu0 0.0
    %442 = vmatprep.subr.mxu0 0.0
    %443 = vmatpush1.xpose.msra.mxu0 0.0
    %444 = vmatprep.subr.mxu0 0.0
    %445 = vmatpush1.xpose.msra.mxu0 0.0
    %446 = vmatprep.subr.mxu0 0.0
    %447 = vmatpush1.xpose.msra.mxu0 0.0
    %448 = vmatprep.subr.mxu0 0.0
    %449 = vmatpush1.xpose.msra.mxu0 0.0
    %450 = vmatprep.subr.mxu0 0.0
    %451 = vmatpush1.xpose.msra.mxu0 0.0
    %452 = vmatprep.subr.mxu0 0.0
    %453 = vmatpush1.xpose.msra.mxu0 0.0
    %454 = vmatprep.mubr.f32.mxu0 0.0
    %455 = vmatmul.mubr.f32.gmra.mrb[0].mxu0 %v385
    %v456 = vpop.f32.mrb[0].mxu0
    %v457 = vadd.f32 %v382, %v456
    %v458 = vpop.f32.mrb[0].mxu0
    %459 = vdwg.mxu0
    %vm460 = vcmask 57344
    %461 = vst.msk [vmem:[#allocation10] sm:$0x1] %vm460, %v457
    // Predicated region
    $region50: #{tpu_custom_call.1} parent=1 // pred_check
      _
    $region51: #{tpu_custom_call.1} parent=1 // pred_check_branch
      %463 = sbr.rel (0) target = $region53
    $region52: #{tpu_custom_call.1} parent=1 // pred_region
      %s465 = ssub.s32 16, 16
      %466 = vsyncadd [#allocation4], %s465
      %s468 = sshll.u32 [#allocation10], 4
      %s469 = int_to_ptr.vmem [resolvable:$true] %s468
      %471 = dma.vmem_to_hbm [thread:$0]  %s469, 16, %s8, [#allocation4]
    $region53: #{tpu_custom_call.1} parent=1 // pred_fallthru
      _
    // Predicated region
    $region54: #{tpu_custom_call.1} parent=1 // pred_check
      _
    $region55: #{tpu_custom_call.1} parent=1 // pred_check_branch
      %473 = sbr.rel (0) target = $region57
    $region56: #{tpu_custom_call.1} parent=1 // pred_region
      %474 = dma.done [#allocation4], 16
    $region57: #{tpu_custom_call.1} parent=1 // pred_fallthru
      _
    %475 = vsyncpa [#allocation3], 1
    %476 = vsyncpa [#allocation6], 1
    %477 = vsyncpa [#allocation9], 1
    %478 = vsyncpa [#allocation4], 1

</llo_original>
